<compile_context>
chip_gen: v7x
topology: tpu7x:2x2x1
jax: 0.10.0
libtpu: 0.0.40
codegen_flags: <defaults>
</compile_context>

<pallas_src>
import jax
import jax.numpy as jnp
from jax.experimental import pallas as pl
from jax.experimental.pallas import tpu as pltpu


def _round_up(x, m):
    return ((x + m - 1) // m) * m


# --------------------------------------------------------------------------- kernel
def _mlp_lif_kernel(x_ref, w1_ref, sh1_ref, w2_ref, sh2_ref, out_ref, v1_ref, v2_ref):
    t = pl.program_id(1)

    @pl.when(t == 0)
    def _():
        v1_ref[...] = jnp.zeros_like(v1_ref)
        v2_ref[...] = jnp.zeros_like(v2_ref)

    x = x_ref[0]                                  # (TILE_M, Cp)
    if x.dtype != jnp.bfloat16:                   # cast in VMEM when fed un-padded f32
        x = x.astype(jnp.bfloat16)

    # fc1_linear + folded fc1_bn (+ folded 1/tau); bf16 MXU feed, f32 accumulate.
    h = jnp.dot(x, w1_ref[...], preferred_element_type=jnp.float32) + sh1_ref[...]
    v1 = v1_ref[...] * 0.5 + h                    # v = 0.5*v_prev + 0.5*(lin+bn)
    s1 = v1 >= 1.0
    v1_ref[...] = jnp.where(s1, 0.0, v1)          # hard reset to 0

    # fc2_linear + folded fc2_bn (+ folded 1/tau); spikes are exact in bf16.
    y = jnp.dot(s1.astype(jnp.bfloat16), w2_ref[...],
                preferred_element_type=jnp.float32) + sh2_ref[...]
    v2 = v2_ref[...] * 0.5 + y
    s2 = v2 >= 1.0
    v2_ref[...] = jnp.where(s2, 0.0, v2)

    out_ref[0] = s2.astype(out_ref.dtype)         # bf16 spikes ({0,1} exact)


# --------------------------------------------------------------------------- params
def _fold_params(params):
    """Fold eval-mode BN + linear bias + LIF 1/tau into (bf16 weights, f32 shift)."""
    eps = 1e-5
    sc1 = params["bn1_gamma"] / jnp.sqrt(params["bn1_var"] + eps)
    sh1 = ((params["b1"] - params["bn1_mean"]) * sc1 + params["bn1_beta"]) * 0.5
    w1f = (params["w1"] * (sc1 * 0.5)[None, :]).astype(jnp.bfloat16)

    sc2 = params["bn2_gamma"] / jnp.sqrt(params["bn2_var"] + eps)
    sh2 = ((params["b2"] - params["bn2_mean"]) * sc2 + params["bn2_beta"]) * 0.5
    w2f = (params["w2"] * (sc2 * 0.5)[None, :]).astype(jnp.bfloat16)
    return w1f, sh1.astype(jnp.float32), w2f, sh2.astype(jnp.float32)


def prepare_params(params):
    """Fold + pad + cast ONCE per layer (hoisted out of the per-call path)."""
    C, H = params["w1"].shape
    Cp, Hp = _round_up(C, 128), _round_up(H, 128)
    w1f, sh1, w2f, sh2 = _fold_params(params)
    if (Cp, Hp) != (C, H):
        w1p = jnp.zeros((Cp, Hp), jnp.bfloat16).at[:C, :H].set(w1f)
        w2p = jnp.zeros((Hp, Cp), jnp.bfloat16).at[:H, :C].set(w2f)
        sh1p = jnp.zeros((1, Hp), jnp.float32).at[0, :H].set(sh1)
        sh2p = jnp.zeros((1, Cp), jnp.float32).at[0, :C].set(sh2)
    else:
        w1p, w2p = w1f, w2f
        sh1p, sh2p = sh1[None, :], sh2[None, :]
    return {"w1": w1p, "sh1": sh1p, "w2": w2p, "sh2": sh2p,
            "C": C, "H": H, "Cp": Cp, "Hp": Hp}


# --------------------------------------------------------------------------- wrapper
def _vmem_capacity_bytes():
    try:
        info = pltpu.get_tpu_info()
        cap = getattr(info, "vmem_capacity_bytes", None)
        if cap:
            return int(cap)
    except Exception:
        pass
    return 64 * 1024 * 1024          # conservative: v7x per-TensorCore VMEM


def _vmem_estimate(tile, Cp, Hp, x_bytes):
    buf_io = 2 * tile * Cp * x_bytes + 2 * tile * Cp * 2      # x + bf16 spike out (x2 buffers)
    weights = 2 * (Cp * Hp + Hp * Cp) * 2 + 2 * (Hp + Cp) * 4  # double-buffered (constant maps)
    scratch = tile * (Hp + Cp) * 4                             # membrane potentials
    temps = tile * (Hp + Cp) * 4                               # h / y f32 temporaries
    return buf_io + weights + scratch + temps


def mlp_forward(x, prepared, *, tile_m=1024, out_dtype=jnp.bfloat16):
    """x: (T, B, N, C) -> (T, B, N, C) spikes in {0, 1} (bf16 by default)."""
    T, B, N, C = x.shape
    assert C == prepared["C"], (C, prepared["C"])
    Cp, Hp = prepared["Cp"], prepared["Hp"]
    M = B * N

    # ---- tile selection: big tiles to amortize ~0.35us/step, >=2 M tiles, VMEM-bounded.
    vmem_cap = _vmem_capacity_bytes()
    budget = int(0.6 * vmem_cap)
    x_bytes = 2 if Cp != C else jnp.dtype(x.dtype).itemsize

    tile = max(16, _round_up(min(tile_m, M), 16))
    if _round_up(M, tile) // tile < 2 and M > 16:
        tile = max(16, _round_up(pl.cdiv(M, 2), 16))          # allow dual-TC / megacore split
    while tile > 128 and _vmem_estimate(tile, Cp, Hp, x_bytes) > budget:
        tile = max(128, _round_up(tile // 2, 16))
    Mp = _round_up(M, tile)
    num_m = Mp // tile

    # ---- x: pad only when actually needed (skips a full HBM pass for aligned ViT dims).
    x_flat = x.reshape(T, M, C)
    needs_pad = (Cp != C) or (Mp != M)
    if needs_pad:
        x_in = jnp.zeros((T, Mp, Cp), jnp.bfloat16).at[:, :M, :C].set(
            x_flat.astype(jnp.bfloat16))
    else:
        x_in = x_flat                      # native dtype; kernel casts to bf16 in VMEM

    est = _vmem_estimate(tile, Cp, Hp, jnp.dtype(x_in.dtype).itemsize)
    vmem_limit = min(max(int(est * 1.5), 32 * 1024 * 1024), int(vmem_cap * 0.85))

    out = pl.pallas_call(
        _mlp_lif_kernel,
        out_shape=jax.ShapeDtypeStruct((T, Mp, Cp), out_dtype),
        grid_spec=pltpu.PrefetchScalarGridSpec(
            num_scalar_prefetch=0,
            grid=(num_m, T),                                   # T innermost: recurrence
            in_specs=[
                pl.BlockSpec((1, tile, Cp), lambda m, t: (t, m, 0)),  # x, one (t, m) tile
                pl.BlockSpec((Cp, Hp), lambda m, t: (0, 0)),          # W1 (BN+1/tau folded)
                pl.BlockSpec((1, Hp), lambda m, t: (0, 0)),           # shift1
                pl.BlockSpec((Hp, Cp), lambda m, t: (0, 0)),          # W2 (BN+1/tau folded)
                pl.BlockSpec((1, Cp), lambda m, t: (0, 0)),           # shift2
            ],
            out_specs=pl.BlockSpec((1, tile, Cp), lambda m, t: (t, m, 0)),
            scratch_shapes=[
                pltpu.VMEM((tile, Hp), jnp.float32),   # fc1_lif membrane potential
                pltpu.VMEM((tile, Cp), jnp.float32),   # fc2_lif membrane potential
            ],
        ),
        compiler_params=pltpu.CompilerParams(
            dimension_semantics=("parallel", "arbitrary"),
            vmem_limit_bytes=vmem_limit,
        ),
    )(x_in, prepared["w1"], prepared["sh1"], prepared["w2"], prepared["sh2"])

    if needs_pad:
        out = out[:, :M, :C]
    return out.reshape(T, B, N, C)


# --------------------------------------------------------------------------- reference
def mlp_reference(x, params):
    """Pure-JAX reference with the same folded/bf16-matmul numerics."""
    T, B, N, C = x.shape
    H = params["w1"].shape[1]
    M = B * N
    w1f, sh1, w2f, sh2 = _fold_params(params)

    xf = x.reshape(T, M, C).astype(jnp.bfloat16)
    v1 = jnp.zeros((M, H), jnp.float32)
    v2 = jnp.zeros((M, C), jnp.float32)
    outs = []
    for t in range(T):
        h = jnp.dot(xf[t], w1f, preferred_element_type=jnp.float32) + sh1
        v1 = 0.5 * v1 + h
        s1 = v1 >= 1.0
        v1 = jnp.where(s1, 0.0, v1)
        y = jnp.dot(s1.astype(jnp.bfloat16), w2f, preferred_element_type=jnp.float32) + sh2
        v2 = 0.5 * v2 + y
        s2 = v2 >= 1.0
        v2 = jnp.where(s2, 0.0, v2)
        outs.append(s2.astype(jnp.float32))
    return jnp.stack(outs).reshape(T, B, N, C)


def make_params(key, in_features, hidden_features):
    C, H = in_features, hidden_features
    ks = jax.random.split(key, 10)
    bound1 = 1.0 / (C ** 0.5)
    bound2 = 1.0 / (H ** 0.5)
    return {
        # Linear weights stored as (in, out); equivalent to PyTorch (out, in) transposed.
        "w1": jax.random.uniform(ks[0], (C, H), jnp.float32, -bound1, bound1),
        "b1": jax.random.uniform(ks[1], (H,), jnp.float32, -bound1, bound1),
        "w2": jax.random.uniform(ks[2], (H, C), jnp.float32, -bound2, bound2),
        "b2": jax.random.uniform(ks[3], (C,), jnp.float32, -bound2, bound2),
        # BatchNorm (eval-mode) parameters / running statistics.
        "bn1_gamma": 1.0 + 0.1 * jax.random.normal(ks[4], (H,), jnp.float32),
        "bn1_beta": 0.1 * jax.random.normal(ks[5], (H,), jnp.float32),
        "bn1_mean": 0.05 * jax.random.normal(ks[6], (H,), jnp.float32),
        "bn1_var": jnp.abs(1.0 + 0.1 * jax.random.normal(ks[7], (H,), jnp.float32)),
        "bn2_gamma": 1.0 + 0.1 * jax.random.normal(ks[8], (C,), jnp.float32),
        "bn2_beta": 0.1 * jax.random.normal(ks[9], (C,), jnp.float32),
        "bn2_mean": jnp.zeros((C,), jnp.float32),
        "bn2_var": jnp.ones((C,), jnp.float32),
    }


if __name__ == "__main__":
    T, B, N, C, H = 4, 2, 16, 32, 64   # M = B*N = 32 (auto-splits into 2 M-tiles)

    key = jax.random.PRNGKey(0)
    k_x, k_p = jax.random.split(key)
    # Scale the input so the LIF neurons actually emit some spikes.
    x = 2.0 * jax.random.normal(k_x, (T, B, N, C), jnp.float32)
    params = make_params(k_p, C, H)

    prepared = prepare_params(params)                 # fold/pad/cast once per layer
    out = jax.block_until_ready(mlp_forward(x, prepared))
    ref = jax.block_until_ready(mlp_reference(x, params))

    assert out.shape == (T, B, N, C), out.shape
    out_f = out.astype(jnp.float32)
    # Output must be binary spikes.
    assert bool(jnp.all((out_f == 0.0) | (out_f == 1.0))), "non-binary spike output"
    # Thresholding can flip a spike on ulp-level matmul differences; allow a tiny fraction.
    mismatch = float(jnp.mean((out_f != ref).astype(jnp.float32)))
    assert mismatch <= 1e-2, f"spike mismatch fraction too high: {mismatch}"
    print("KERNEL_OK")
</pallas_src>

<mosaic_0001>
module attributes {stable_mosaic.version = 11 : i64} {
  func.func @_mlp_lif_kernel(%arg0: i32, %arg1: i32, %arg2: memref<1x16x128xbf16, #tpu.memory_space<vmem>>, %arg3: memref<128x128xbf16, #tpu.memory_space<vmem>>, %arg4: memref<1x128xf32, #tpu.memory_space<vmem>>, %arg5: memref<128x128xbf16, #tpu.memory_space<vmem>>, %arg6: memref<1x128xf32, #tpu.memory_space<vmem>>, %arg7: memref<1x16x128xbf16, #tpu.memory_space<vmem>>, %arg8: memref<16x128xf32, #tpu.memory_space<vmem>>, %arg9: memref<16x128xf32, #tpu.memory_space<vmem>>) attributes {dimension_semantics = [#tpu.dimension_semantics<parallel>, #tpu.dimension_semantics<arbitrary>], iteration_bounds = array<i64: 2, 4>, scalar_prefetch = 0 : i64, scratch_operands = 2 : i64, tpu.core_type = #tpu.core_type<tc>, window_params = [{transform_indices = @transform_0, window_bounds = array<i64: 1, 16, 128>}, {pipeline_mode = #tpu.pipeline_mode<synchronous>, transform_indices = @transform_1, window_bounds = array<i64: 128, 128>}, {pipeline_mode = #tpu.pipeline_mode<synchronous>, transform_indices = @transform_2, window_bounds = array<i64: 1, 128>}, {pipeline_mode = #tpu.pipeline_mode<synchronous>, transform_indices = @transform_3, window_bounds = array<i64: 128, 128>}, {pipeline_mode = #tpu.pipeline_mode<synchronous>, transform_indices = @transform_4, window_bounds = array<i64: 1, 128>}, {transform_indices = @transform_5, window_bounds = array<i64: 1, 16, 128>}]} {
    %c0_i32 = arith.constant 0 : i32
    %0 = arith.cmpi eq, %arg1, %c0_i32 : i32
    %1 = arith.extui %0 : i1 to i32
    %c0_i32_0 = arith.constant 0 : i32
    %2 = arith.cmpi ne, %1, %c0_i32_0 : i32
    scf.if %2 {
      %cst_29 = arith.constant 0.000000e+00 : f32
      %42 = vector.broadcast %cst_29 : f32 to vector<16x128xf32>
      %c0_30 = arith.constant 0 : index
      %c0_31 = arith.constant 0 : index
      %43 = vector.load %arg8[%c0_30, %c0_31] : memref<16x128xf32, #tpu.memory_space<vmem>>, vector<16x128xf32>
      tpu.vector_store %arg8[%c0_30, %c0_31], %42 {strides = array<i32>} : memref<16x128xf32, #tpu.memory_space<vmem>>, vector<16x128xf32>,
      %cst_32 = arith.constant 0.000000e+00 : f32
      %44 = vector.broadcast %cst_32 : f32 to vector<16x128xf32>
      %c0_33 = arith.constant 0 : index
      %c0_34 = arith.constant 0 : index
      %45 = vector.load %arg9[%c0_33, %c0_34] : memref<16x128xf32, #tpu.memory_space<vmem>>, vector<16x128xf32>
      tpu.vector_store %arg9[%c0_33, %c0_34], %44 {strides = array<i32>} : memref<16x128xf32, #tpu.memory_space<vmem>>, vector<16x128xf32>,
    } else {
    }
    %c0 = arith.constant 0 : index
    %c0_1 = arith.constant 0 : index
    %c0_2 = arith.constant 0 : index
    %3 = vector.load %arg2[%c0, %c0_1, %c0_2] : memref<1x16x128xbf16, #tpu.memory_space<vmem>>, vector<1x16x128xbf16>
    %4 = vector.shape_cast %3 : vector<1x16x128xbf16> to vector<16x128xbf16>
    %c0_3 = arith.constant 0 : index
    %c0_4 = arith.constant 0 : index
    %5 = vector.load %arg3[%c0_3, %c0_4] : memref<128x128xbf16, #tpu.memory_space<vmem>>, vector<128x128xbf16>
    %cst = arith.constant dense<0.000000e+00> : vector<16x128xf32>
    %6 = tpu.matmul %4, %5, %cst {dimension_numbers = #tpu.dot_dimension_numbers<[1], [0], [0], [1], [0, 0, 1, 1], [], []>} : vector<16x128xbf16>, vector<128x128xbf16>, vector<16x128xf32> -> vector<16x128xf32>
    %c0_5 = arith.constant 0 : index
    %c0_6 = arith.constant 0 : index
    %7 = vector.load %arg4[%c0_5, %c0_6] : memref<1x128xf32, #tpu.memory_space<vmem>>, vector<1x128xf32>
    %8 = vector.broadcast %7 : vector<1x128xf32> to vector<16x128xf32>
    %9 = arith.addf %6, %8 : vector<16x128xf32>
    %c0_7 = arith.constant 0 : index
    %c0_8 = arith.constant 0 : index
    %10 = vector.load %arg8[%c0_7, %c0_8] : memref<16x128xf32, #tpu.memory_space<vmem>>, vector<16x128xf32>
    %cst_9 = arith.constant 5.000000e-01 : f32
    %11 = vector.broadcast %cst_9 : f32 to vector<16x128xf32>
    %12 = arith.mulf %10, %11 : vector<16x128xf32>
    %13 = arith.addf %12, %9 : vector<16x128xf32>
    %cst_10 = arith.constant 1.000000e+00 : f32
    %14 = vector.broadcast %cst_10 : f32 to vector<16x128xf32>
    %15 = arith.cmpf oge, %13, %14 : vector<16x128xf32>
    %cst_11 = arith.constant 0.000000e+00 : f32
    %16 = vector.broadcast %cst_11 : f32 to vector<16x128xf32>
    %17 = arith.select %15, %16, %13 : vector<16x128xi1>, vector<16x128xf32>
    %c0_12 = arith.constant 0 : index
    %c0_13 = arith.constant 0 : index
    %18 = vector.load %arg8[%c0_12, %c0_13] : memref<16x128xf32, #tpu.memory_space<vmem>>, vector<16x128xf32>
    tpu.vector_store %arg8[%c0_12, %c0_13], %17 {strides = array<i32>} : memref<16x128xf32, #tpu.memory_space<vmem>>, vector<16x128xf32>,
    %19 = arith.extui %15 : vector<16x128xi1> to vector<16x128xi32>
    %20 = arith.sitofp %19 : vector<16x128xi32> to vector<16x128xf32>
    %21 = arith.truncf %20 : vector<16x128xf32> to vector<16x128xbf16>
    %c0_14 = arith.constant 0 : index
    %c0_15 = arith.constant 0 : index
    %22 = vector.load %arg5[%c0_14, %c0_15] : memref<128x128xbf16, #tpu.memory_space<vmem>>, vector<128x128xbf16>
    %cst_16 = arith.constant dense<0.000000e+00> : vector<16x128xf32>
    %23 = tpu.matmul %21, %22, %cst_16 {dimension_numbers = #tpu.dot_dimension_numbers<[1], [0], [0], [1], [0, 0, 1, 1], [], []>} : vector<16x128xbf16>, vector<128x128xbf16>, vector<16x128xf32> -> vector<16x128xf32>
    %c0_17 = arith.constant 0 : index
    %c0_18 = arith.constant 0 : index
    %24 = vector.load %arg6[%c0_17, %c0_18] : memref<1x128xf32, #tpu.memory_space<vmem>>, vector<1x128xf32>
    %25 = vector.broadcast %24 : vector<1x128xf32> to vector<16x128xf32>
    %26 = arith.addf %23, %25 : vector<16x128xf32>
    %c0_19 = arith.constant 0 : index
    %c0_20 = arith.constant 0 : index
    %27 = vector.load %arg9[%c0_19, %c0_20] : memref<16x128xf32, #tpu.memory_space<vmem>>, vector<16x128xf32>
    %cst_21 = arith.constant 5.000000e-01 : f32
    %28 = vector.broadcast %cst_21 : f32 to vector<16x128xf32>
    %29 = arith.mulf %27, %28 : vector<16x128xf32>
    %30 = arith.addf %29, %26 : vector<16x128xf32>
    %cst_22 = arith.constant 1.000000e+00 : f32
    %31 = vector.broadcast %cst_22 : f32 to vector<16x128xf32>
    %32 = arith.cmpf oge, %30, %31 : vector<16x128xf32>
    %cst_23 = arith.constant 0.000000e+00 : f32
    %33 = vector.broadcast %cst_23 : f32 to vector<16x128xf32>
    %34 = arith.select %32, %33, %30 : vector<16x128xi1>, vector<16x128xf32>
    %c0_24 = arith.constant 0 : index
    %c0_25 = arith.constant 0 : index
    %35 = vector.load %arg9[%c0_24, %c0_25] : memref<16x128xf32, #tpu.memory_space<vmem>>, vector<16x128xf32>
    tpu.vector_store %arg9[%c0_24, %c0_25], %34 {strides = array<i32>} : memref<16x128xf32, #tpu.memory_space<vmem>>, vector<16x128xf32>,
    %36 = arith.extui %32 : vector<16x128xi1> to vector<16x128xi32>
    %37 = arith.sitofp %36 : vector<16x128xi32> to vector<16x128xf32>
    %38 = arith.truncf %37 : vector<16x128xf32> to vector<16x128xbf16>
    %c0_26 = arith.constant 0 : index
    %c0_27 = arith.constant 0 : index
    %c0_28 = arith.constant 0 : index
    %39 = vector.load %arg7[%c0_26, %c0_27, %c0_28] : memref<1x16x128xbf16, #tpu.memory_space<vmem>>, vector<1x16x128xbf16>
    %40 = vector.shape_cast %39 : vector<1x16x128xbf16> to vector<16x128xbf16>
    %41 = vector.shape_cast %38 : vector<16x128xbf16> to vector<1x16x128xbf16>
    tpu.vector_store %arg7[%c0_26, %c0_27, %c0_28], %41 {strides = array<i32>} : memref<1x16x128xbf16, #tpu.memory_space<vmem>>, vector<1x16x128xbf16>,
    return
  }
  func.func @transform_0(%arg0: i32, %arg1: i32) -> (i32, i32, i32) {
    %c0_i32 = arith.constant 0 : i32
    %c0_i32_0 = arith.constant 0 : i32
    return %arg1, %arg0, %c0_i32 : i32, i32, i32
  }
  func.func @transform_1(%arg0: i32, %arg1: i32) -> (i32, i32) {
    %c0_i32 = arith.constant 0 : i32
    %c0_i32_0 = arith.constant 0 : i32
    %c0_i32_1 = arith.constant 0 : i32
    return %c0_i32, %c0_i32_0 : i32, i32
  }
  func.func @transform_2(%arg0: i32, %arg1: i32) -> (i32, i32) {
    %c0_i32 = arith.constant 0 : i32
    %c0_i32_0 = arith.constant 0 : i32
    %c0_i32_1 = arith.constant 0 : i32
    return %c0_i32, %c0_i32_0 : i32, i32
  }
  func.func @transform_3(%arg0: i32, %arg1: i32) -> (i32, i32) {
    %c0_i32 = arith.constant 0 : i32
    %c0_i32_0 = arith.constant 0 : i32
    %c0_i32_1 = arith.constant 0 : i32
    return %c0_i32, %c0_i32_0 : i32, i32
  }
  func.func @transform_4(%arg0: i32, %arg1: i32) -> (i32, i32) {
    %c0_i32 = arith.constant 0 : i32
    %c0_i32_0 = arith.constant 0 : i32
    %c0_i32_1 = arith.constant 0 : i32
    return %c0_i32, %c0_i32_0 : i32, i32
  }
  func.func @transform_5(%arg0: i32, %arg1: i32) -> (i32, i32, i32) {
    %c0_i32 = arith.constant 0 : i32
    %c0_i32_0 = arith.constant 0 : i32
    return %arg1, %arg0, %c0_i32 : i32, i32, i32
  }
}

</mosaic_0001>

<llo_original>
// kernel: tpu_custom_call.1
$region0: #{tpu_custom_call.1}
  #allocation0 [shape = 'u32[]', space=smem, size = 0x4, offset = 0x4, fixed_abs, tag = 'smem constant byte address 0x4 - core index']
  #allocation1 [shape = 'u32[144,128]{1,0:T(1,128)}', space=vmem, size = 0x12000, scoped, tag = 'internal scratch']
  #allocation2 [shape = 'f32[16,128]{1,0:T(8,128)}', space=vmem, size = 0x2000, scoped, tag = 'scratch operand']
  #allocation3 [shape = 'f32[16,128]{1,0:T(8,128)}', space=vmem, size = 0x2000, scoped, tag = 'scratch operand']
  %s0 = inlined_call_operand.hbm [shape: bf16[4,32,128], index: 0, kind: input, shape index: {}]
  %s1 = inlined_call_operand.hbm [shape: bf16[128,128], index: 1, kind: input, shape index: {}]
  %s2 = inlined_call_operand.vmem [shape: f32[1,128], index: 2, kind: input, shape index: {}]
  %s3 = inlined_call_operand.hbm [shape: bf16[128,128], index: 3, kind: input, shape index: {}]
  %s4 = inlined_call_operand.vmem [shape: f32[1,128], index: 4, kind: input, shape index: {}]
  %s5 = inlined_call_operand.hbm [shape: bf16[4,32,128], index: 5, kind: output, shape index: {}]
  %s6 = sld [smem:[#allocation0]]
  $region69: #{tpu_custom_call.1} parent=0
    _
  %s8 = ssub.s32 1, %s6
  %s9 = scalar_select 0, %s8, %s6
  $region1: #{tpu_custom_call.1} parent=0
    #allocation4 [shape = 'u8[8192]{0}', space=vmem, size = 0x2000, scoped, tag = 'input window, operand 0']
    #allocation5 [shape = 's32[2]{0}', space=sflag, size = 0x8, scoped, tag = 'scoped memory for tpu_custom_call.1']
    #allocation6 [shape = 's32[2]{0}', space=sflag, size = 0x8, scoped, tag = 'scoped memory for tpu_custom_call.1']
    #allocation7 [shape = 'u8[32768]{0}', space=vmem, size = 0x8000, scoped, tag = 'input window, operand 1, single buffered']
    #allocation8 [shape = 's32[1]{0}', space=sflag, size = 0x4, scoped, tag = 'scoped memory for tpu_custom_call.1']
    #allocation9 [shape = 'u8[32768]{0}', space=vmem, size = 0x8000, scoped, tag = 'input window, operand 3, single buffered']
    #allocation10 [shape = 'u8[8192]{0}', space=vmem, size = 0x2000, scoped, tag = 'output window, operand 0']
    %10 = vsyncpa [#allocation5], 0
    %s11 = scalar_lea.sflag [#allocation5], 1
    %12 = vsyncpa %s11, 0
    %13 = vsyncpa [#allocation8], 0
    %14 = vsyncpa [#allocation6], 0
    %s15 = scalar_lea.sflag [#allocation6], 1
    %16 = vsyncpa %s15, 0
    loop: start=0, step=1, limit=10
    $region2: #{tpu_custom_call.1} parent=1 // loop_pre_header
      _
    $region3: #{tpu_custom_call.1} parent=1 // loop_header
      %s18 = sphi 0, %s22
      %p19 = scmp.ge.s32.totalorder %s18, 10
      %s25 = sphi 0, %s37
      %s26 = sphi 0, %s33
      %s27 = sphi 0, %s25
      %s28 = sphi 0, %s26
      %s29 = sphi 0, %s27
      %s30 = sphi 0, %s28
      %s42 = sphi 0, %s44
      %s45 = sphi 0, %s42
      %s46 = sphi 0, %s45
      %s62 = sphi 0, %s46
      %s66 = sphi 0, %s66
      %s68 = sphi 0, %s66
      %s69 = sphi 0, %s68
      %s83 = sphi 0, %s69
      %s87 = sphi 0, %s87
      %s89 = sphi 0, %s87
      %s90 = sphi 0, %s89
      %s104 = sphi 0, %s90
      %s108 = sphi 0, %s108
      %s110 = sphi 0, %s108
      %s111 = sphi 0, %s110
      %s125 = sphi 0, %s111
      %s129 = sphi 0, %s129
      %s131 = sphi 0, %s129
      %s132 = sphi 0, %s131
      %s146 = sphi 0, %s132
      %s154 = sphi 0, %s156
      %s157 = sphi 0, %s154
      %s158 = sphi 0, %s157
      %s174 = sphi 0, %s158
    $region4: #{tpu_custom_call.1} parent=1 // loop_header_branch
      %21 = sbr.rel (%p19) target = $region8
    $region5: #{tpu_custom_call.1} parent=1 // loop_body
      %s23 = ssub.s32 %s18, 1
      %s24 = ssub.s32 %s18, 2
      %s31 = sadd.s32 1, %s26
      %p32 = scmp.ge.s32.totalorder %s31, 4
      %s33 = scalar_select %p32, 0, %s31
      %s34 = sadd.s32 1, %s25
      %s35 = scalar_select %p32, %s34, %s25
      %p36 = scmp.ge.s32.totalorder %s35, 2
      %s37 = scalar_select %p36, 0, %s35
      %s38 = ssub.s32 %s26, %s33
      %s39 = ssub.s32 %s25, %s37
      %s40 = sor.u32 %s38, %s39
      %p41 = scmp.eq.s32.totalorder %s40, 0
      %s43 = sadd.s32 %s42, 1
      %s44 = scalar_select %p41, %s42, %s43
      %p47 = pneg %p41
      %p48 = scmp.eq.s32.totalorder %s18, 7
      %p49 = por %p47, %p48
      %p50 = scmp.ne.s32.totalorder %s42, %s45
      %p51 = scmp.eq.s32.totalorder %s18, 0
      %p52 = por %p50, %p51
      %p53 = scmp.ne.s32.totalorder %s42, %s45
      %p54 = scmp.eq.s32.totalorder %s23, 7
      %p55 = por %p53, %p54
      %p56 = scmp.ne.s32.totalorder %s45, %s46
      %p57 = scmp.eq.s32.totalorder %s23, 0
      %p58 = por %p56, %p57
      %p59 = scmp.ne.s32.totalorder %s45, %s46
      %p60 = scmp.eq.s32.totalorder %s24, 7
      %p61 = por %p59, %p60
      %p63 = scmp.ne.s32.totalorder %s46, %s62
      %p64 = scmp.eq.s32.totalorder %s24, 0
      %p65 = por %p63, %p64
      %s67 = sadd.s32 %s66, 1
      %p70 = scmp.eq.s32.totalorder %s18, 7
      %p71 = scmp.ne.s32.totalorder %s66, %s68
      %p72 = scmp.eq.s32.totalorder %s18, 0
      %p73 = por %p71, %p72
      %p74 = scmp.ne.s32.totalorder %s66, %s68
      %p75 = scmp.eq.s32.totalorder %s23, 7
      %p76 = por %p74, %p75
      %p77 = scmp.ne.s32.totalorder %s68, %s69
      %p78 = scmp.eq.s32.totalorder %s23, 0
      %p79 = por %p77, %p78
      %p80 = scmp.ne.s32.totalorder %s68, %s69
      %p81 = scmp.eq.s32.totalorder %s24, 7
      %p82 = por %p80, %p81
      %p84 = scmp.ne.s32.totalorder %s69, %s83
      %p85 = scmp.eq.s32.totalorder %s24, 0
      %p86 = por %p84, %p85
      %s88 = sadd.s32 %s87, 1
      %p91 = scmp.eq.s32.totalorder %s18, 7
      %p92 = scmp.ne.s32.totalorder %s87, %s89
      %p93 = scmp.eq.s32.totalorder %s18, 0
      %p94 = por %p92, %p93
      %p95 = scmp.ne.s32.totalorder %s87, %s89
      %p96 = scmp.eq.s32.totalorder %s23, 7
      %p97 = por %p95, %p96
      %p98 = scmp.ne.s32.totalorder %s89, %s90
      %p99 = scmp.eq.s32.totalorder %s23, 0
      %p100 = por %p98, %p99
      %p101 = scmp.ne.s32.totalorder %s89, %s90
      %p102 = scmp.eq.s32.totalorder %s24, 7
      %p103 = por %p101, %p102
      %p105 = scmp.ne.s32.totalorder %s90, %s104
      %p106 = scmp.eq.s32.totalorder %s24, 0
      %p107 = por %p105, %p106
      %s109 = sadd.s32 %s108, 1
      %p112 = scmp.eq.s32.totalorder %s18, 7
      %p113 = scmp.ne.s32.totalorder %s108, %s110
      %p114 = scmp.eq.s32.totalorder %s18, 0
      %p115 = por %p113, %p114
      %p116 = scmp.ne.s32.totalorder %s108, %s110
      %p117 = scmp.eq.s32.totalorder %s23, 7
      %p118 = por %p116, %p117
      %p119 = scmp.ne.s32.totalorder %s110, %s111
      %p120 = scmp.eq.s32.totalorder %s23, 0
      %p121 = por %p119, %p120
      %p122 = scmp.ne.s32.totalorder %s110, %s111
      %p123 = scmp.eq.s32.totalorder %s24, 7
      %p124 = por %p122, %p123
      %p126 = scmp.ne.s32.totalorder %s111, %s125
      %p127 = scmp.eq.s32.totalorder %s24, 0
      %p128 = por %p126, %p127
      %s130 = sadd.s32 %s129, 1
      %p133 = scmp.eq.s32.totalorder %s18, 7
      %p134 = scmp.ne.s32.totalorder %s129, %s131
      %p135 = scmp.eq.s32.totalorder %s18, 0
      %p136 = por %p134, %p135
      %p137 = scmp.ne.s32.totalorder %s129, %s131
      %p138 = scmp.eq.s32.totalorder %s23, 7
      %p139 = por %p137, %p138
      %p140 = scmp.ne.s32.totalorder %s131, %s132
      %p141 = scmp.eq.s32.totalorder %s23, 0
      %p142 = por %p140, %p141
      %p143 = scmp.ne.s32.totalorder %s131, %s132
      %p144 = scmp.eq.s32.totalorder %s24, 7
      %p145 = por %p143, %p144
      %p147 = scmp.ne.s32.totalorder %s132, %s146
      %p148 = scmp.eq.s32.totalorder %s24, 0
      %p149 = por %p147, %p148
      %s150 = ssub.s32 %s26, %s33
      %s151 = ssub.s32 %s25, %s37
      %s152 = sor.u32 %s150, %s151
      %p153 = scmp.eq.s32.totalorder %s152, 0
      %s155 = sadd.s32 %s154, 1
      %s156 = scalar_select %p153, %s154, %s155
      %p159 = pneg %p153
      %p160 = scmp.eq.s32.totalorder %s18, 7
      %p161 = por %p159, %p160
      %p162 = scmp.ne.s32.totalorder %s154, %s157
      %p163 = scmp.eq.s32.totalorder %s18, 0
      %p164 = por %p162, %p163
      %p165 = scmp.ne.s32.totalorder %s154, %s157
      %p166 = scmp.eq.s32.totalorder %s23, 7
      %p167 = por %p165, %p166
      %p168 = scmp.ne.s32.totalorder %s157, %s158
      %p169 = scmp.eq.s32.totalorder %s23, 0
      %p170 = por %p168, %p169
      %p171 = scmp.ne.s32.totalorder %s157, %s158
      %p172 = scmp.eq.s32.totalorder %s24, 7
      %p173 = por %p171, %p172
      %p175 = scmp.ne.s32.totalorder %s158, %s174
      %p176 = scmp.eq.s32.totalorder %s24, 0
      %p177 = por %p175, %p176
      %p178 = scmp.le.s32.totalorder 1, %s18
      %p179 = scmp.lt.s32.totalorder %s18, 9
      %p180 = pnand %p178, %p179
      %p181 = pneg %p180
      // Predicated region
      $region9: #{tpu_custom_call.1} parent=5 // pred_check
        _
      $region10: #{tpu_custom_call.1} parent=5 // pred_check_branch
        %183 = sbr.rel (%p180) target = $region12
      $region11: #{tpu_custom_call.1} parent=5 // pred_region
        %s184 = ssub.s32 %s18, 1
        // Predicated region
        $region13: #{tpu_custom_call.1} parent=11 // pred_check
          %p185 = pneg %p79
        $region14: #{tpu_custom_call.1} parent=11 // pred_check_branch
          %187 = sbr.rel (%p185) target = $region16
        $region15: #{tpu_custom_call.1} parent=11 // pred_region
          %s189 = ssub.s32 1024, 1024
          %190 = vsyncadd [#allocation8], %s189
          %s191 = sshll.u32 [#allocation7], 4
          %s192 = int_to_ptr.vmem [resolvable:$true] %s191
          %197 = dma.hbm_to_vmem [thread:$0]  %s1, 1024, %s192, [#allocation8], 64, 64, 4
        $region16: #{tpu_custom_call.1} parent=11 // pred_fallthru
          _
        // Predicated region
        $region17: #{tpu_custom_call.1} parent=11 // pred_check
          %p198 = pneg %p100
        $region18: #{tpu_custom_call.1} parent=11 // pred_check_branch
          %200 = sbr.rel (%p198) target = $region20
        $region19: #{tpu_custom_call.1} parent=11 // pred_region
          _
        $region20: #{tpu_custom_call.1} parent=11 // pred_fallthru
          _
        // Predicated region
        $region21: #{tpu_custom_call.1} parent=11 // pred_check
          %p201 = pneg %p121
        $region22: #{tpu_custom_call.1} parent=11 // pred_check_branch
          %203 = sbr.rel (%p201) target = $region24
        $region23: #{tpu_custom_call.1} parent=11 // pred_region
          %s205 = ssub.s32 1024, 1024
          %206 = vsyncadd [#allocation8], %s205
          %s207 = sshll.u32 [#allocation9], 4
          %s208 = int_to_ptr.vmem [resolvable:$true] %s207
          %213 = dma.hbm_to_vmem [thread:$0]  %s3, 1024, %s208, [#allocation8], 64, 64, 4
        $region24: #{tpu_custom_call.1} parent=11 // pred_fallthru
          _
        // Predicated region
        $region25: #{tpu_custom_call.1} parent=11 // pred_check
          %p214 = pneg %p142
        $region26: #{tpu_custom_call.1} parent=11 // pred_check_branch
          %216 = sbr.rel (%p214) target = $region28
        $region27: #{tpu_custom_call.1} parent=11 // pred_region
          _
        $region28: #{tpu_custom_call.1} parent=11 // pred_fallthru
          _
      $region12: #{tpu_custom_call.1} parent=5 // pred_fallthru
        _
      %p217 = scmp.lt.s32.totalorder %s18, 8
      // Predicated region
      $region29: #{tpu_custom_call.1} parent=5 // pred_check
        %p218 = pneg %p217
      $region30: #{tpu_custom_call.1} parent=5 // pred_check_branch
        %220 = sbr.rel (%p218) target = $region32
      $region31: #{tpu_custom_call.1} parent=5 // pred_region
        // Predicated region
        $region33: #{tpu_custom_call.1} parent=31 // pred_check
          %p221 = pneg %p52
        $region34: #{tpu_custom_call.1} parent=31 // pred_check_branch
          %223 = sbr.rel (%p221) target = $region36
        $region35: #{tpu_custom_call.1} parent=31 // pred_region
          %s224 = sand.u32 %s42, 1
          %s225 = scalar_lea.sflag [#allocation5], %s224
          %s226 = sand.u32 %s42, 1
          %s227 = smul.addr %s226, 8
          %s228 = scalar_lea.vmem [#allocation4], %s227
          %s229 = smul.u32 2, %s25
          %s231 = ssub.s32 128, 128
          %232 = vsyncadd %s225, %s231
          %s233 = smul.addr %s26, 4
          %s234 = sadd.s32 %s229, %s233
          %s235 = smul.addr %s234, 64
          %s236 = scalar_lea.hbm %s0, %s235
          %s237 = sshll.u32 %s228, 4
          %s238 = int_to_ptr.vmem [resolvable:$true] %s237
          %243 = dma.hbm_to_vmem [thread:$0]  %s236, 128, %s238, %s225, 64, 64, 4
        $region36: #{tpu_custom_call.1} parent=31 // pred_fallthru
          _
      $region32: #{tpu_custom_call.1} parent=5 // pred_fallthru
        _
      %p244 = scmp.le.s32.totalorder 1, %s18
      %p245 = scmp.lt.s32.totalorder %s18, 9
      %p246 = pnand %p244, %p245
      %p247 = pneg %p246
      // Predicated region
      $region37: #{tpu_custom_call.1} parent=5 // pred_check
        _
      $region38: #{tpu_custom_call.1} parent=5 // pred_check_branch
        %249 = sbr.rel (%p246) target = $region40
      $region39: #{tpu_custom_call.1} parent=5 // pred_region
        %s250 = ssub.s32 %s18, 1
        %s251 = sand.u32 %s45, 1
        %s252 = scalar_lea.sflag [#allocation5], %s251
        %s253 = sand.u32 %s45, 1
        %s254 = smul.addr %s253, 8
        %s255 = scalar_lea.vmem [#allocation4], %s254
        // Predicated region
        $region41: #{tpu_custom_call.1} parent=39 // pred_check
          %p256 = pneg %p58
        $region42: #{tpu_custom_call.1} parent=39 // pred_check_branch
          %258 = sbr.rel (%p256) target = $region44
        $region43: #{tpu_custom_call.1} parent=39 // pred_region
          %259 = dma.done %s252, 128
        $region44: #{tpu_custom_call.1} parent=39 // pred_fallthru
          _
        // Predicated region
        $region45: #{tpu_custom_call.1} parent=39 // pred_check
          %p260 = pneg %p79
        $region46: #{tpu_custom_call.1} parent=39 // pred_check_branch
          %262 = sbr.rel (%p260) target = $region48
        $region47: #{tpu_custom_call.1} parent=39 // pred_region
          %263 = dma.done [#allocation8], 1024
        $region48: #{tpu_custom_call.1} parent=39 // pred_fallthru
          _
        // Predicated region
        $region49: #{tpu_custom_call.1} parent=39 // pred_check
          %p264 = pneg %p121
        $region50: #{tpu_custom_call.1} parent=39 // pred_check_branch
          %266 = sbr.rel (%p264) target = $region52
        $region51: #{tpu_custom_call.1} parent=39 // pred_region
          %267 = dma.done [#allocation8], 1024
        $region52: #{tpu_custom_call.1} parent=39 // pred_fallthru
          _
        %s268 = sand.u32 %s45, 1
        %s269 = scalar_lea.sflag [#allocation5], %s268
        %s270 = sand.u32 %s45, 1
        %s271 = smul.addr %s270, 8
        %s272 = scalar_lea.vmem [#allocation4], %s271
        %p273 = pneg %p58
        %p274 = pneg %p55
        %p275 = pneg %p79
        %p276 = pneg %p76
        %p277 = pneg %p100
        %p278 = pneg %p97
        %p279 = pneg %p121
        %p280 = pneg %p118
        %p281 = pneg %p142
        %p282 = pneg %p139
        %p283 = pneg %p170
        %p284 = pneg %p167
        %s285 = sand.u32 %s157, 1
        %s286 = scalar_lea.sflag [#allocation6], %s285
        %s287 = sand.u32 %s157, 1
        %s288 = smul.addr %s287, 8
        %s289 = scalar_lea.vmem [#allocation10], %s288
        %s290 = smul.u32 2, %s27
        %s291 = smul.u32 2, %s27
        %p293 = scmp.eq.s32.totalorder %s28, 0
        // Predicated region
        $region53: #{tpu_custom_call.1} parent=39 // pred_check
          %p294 = pneg %p293
        $region54: #{tpu_custom_call.1} parent=39 // pred_check_branch
          %296 = sbr.rel (%p294) target = $region56
        $region55: #{tpu_custom_call.1} parent=39 // pred_region
          %297 = vst [vmem:[#allocation2] sm:$0xff] 0.0
          %298 = vst [vmem:[#allocation2 + $0x8] sm:$0xff] 0.0
          %299 = vst [vmem:[#allocation3] sm:$0xff] 0.0
          %300 = vst [vmem:[#allocation3 + $0x8] sm:$0xff] 0.0
        $region56: #{tpu_custom_call.1} parent=39 // pred_fallthru
          _
        %v301 = vld [vmem:[%s255] sm:$0xf]
        %v302 = vld [vmem:[%s255 + $0x4] sm:$0xf]
        %v303 = vld [vmem:[#allocation7] sm:$0xf]
        %v304 = vld [vmem:[#allocation7 + $0x4] sm:$0xf]
        %v305 = vld [vmem:[#allocation7 + $0x8] sm:$0xf]
        %v306 = vld [vmem:[#allocation7 + $0xc] sm:$0xf]
        %v307 = vld [vmem:[#allocation7 + $0x10] sm:$0xf]
        %v308 = vld [vmem:[#allocation7 + $0x14] sm:$0xf]
        %v309 = vld [vmem:[#allocation7 + $0x18] sm:$0xf]
        %v310 = vld [vmem:[#allocation7 + $0x1c] sm:$0xf]
        %v311 = vld [vmem:[#allocation7 + $0x20] sm:$0xf]
        %v312 = vld [vmem:[#allocation7 + $0x24] sm:$0xf]
        %v313 = vld [vmem:[#allocation7 + $0x28] sm:$0xf]
        %v314 = vld [vmem:[#allocation7 + $0x2c] sm:$0xf]
        %v315 = vld [vmem:[#allocation7 + $0x30] sm:$0xf]
        %v316 = vld [vmem:[#allocation7 + $0x34] sm:$0xf]
        %v317 = vld [vmem:[#allocation7 + $0x38] sm:$0xf]
        %v318 = vld [vmem:[#allocation7 + $0x3c] sm:$0xf]
        %v319 = vld [vmem:[%s2] sm:$0x1]
        %v321 = vlaneseq
        %v322 = vshrl.u32 %v321, 7
        %v323 = vsub.s32 0, %v322
        %v324 = vrot.slane %v319, %v323
        %v328 = vunpack.c.l.b16 %v301
        %v329 = vunpack.c.l.b16 %v302
        %v330 = vpack.c.b16 %v329, %v328
        %v348 = vunpack.c.l.b16 %v303
        %v349 = vunpack.c.l.b16 %v304
        %v350 = vunpack.c.l.b16 %v305
        %v351 = vunpack.c.l.b16 %v306
        %v352 = vunpack.c.l.b16 %v307
        %v353 = vunpack.c.l.b16 %v308
        %v354 = vunpack.c.l.b16 %v309
        %v355 = vunpack.c.l.b16 %v310
        %v356 = vunpack.c.l.b16 %v311
        %v357 = vunpack.c.l.b16 %v312
        %v358 = vunpack.c.l.b16 %v313
        %v359 = vunpack.c.l.b16 %v314
        %v360 = vunpack.c.l.b16 %v315
        %v361 = vunpack.c.l.b16 %v316
        %v362 = vunpack.c.l.b16 %v317
        %v363 = vunpack.c.l.b16 %v318
        %v364 = vpack.c.b16 %v349, %v348
        %v365 = vpack.c.b16 %v351, %v350
        %v366 = vpack.c.b16 %v353, %v352
        %v367 = vpack.c.b16 %v355, %v354
        %v368 = vpack.c.b16 %v357, %v356
        %v369 = vpack.c.b16 %v359, %v358
        %v370 = vpack.c.b16 %v361, %v360
        %v371 = vpack.c.b16 %v363, %v362
        %380 = vmatprep.subr.bf16.mxu0 0
        %381 = vmatpush1.bf16.msra.mxu0 %v364
        %382 = vmatprep.subr.bf16.mxu0 0
        %383 = vmatpush1.bf16.msra.mxu0 %v365
        %384 = vmatprep.subr.bf16.mxu0 0
        %385 = vmatpush1.bf16.msra.mxu0 %v366
        %386 = vmatprep.subr.bf16.mxu0 0
        %387 = vmatpush1.bf16.msra.mxu0 %v367
        %388 = vmatprep.subr.bf16.mxu0 0
        %389 = vmatpush1.bf16.msra.mxu0 %v368
        %390 = vmatprep.subr.bf16.mxu0 0
        %391 = vmatpush1.bf16.msra.mxu0 %v369
        %392 = vmatprep.subr.bf16.mxu0 0
        %393 = vmatpush1.bf16.msra.mxu0 %v370
        %394 = vmatprep.subr.bf16.mxu0 0
        %395 = vmatpush1.bf16.msra.mxu0 %v371
        %396 = vmatprep.subr.bf16.mxu0 0
        %397 = vmatpush1.bf16.msra.mxu0 0
        %398 = vmatprep.subr.bf16.mxu0 0
        %399 = vmatpush1.bf16.msra.mxu0 0
        %400 = vmatprep.subr.bf16.mxu0 0
        %401 = vmatpush1.bf16.msra.mxu0 0
        %402 = vmatprep.subr.bf16.mxu0 0
        %403 = vmatpush1.bf16.msra.mxu0 0
        %404 = vmatprep.subr.bf16.mxu0 0
        %405 = vmatpush1.bf16.msra.mxu0 0
        %406 = vmatprep.subr.bf16.mxu0 0
        %407 = vmatpush1.bf16.msra.mxu0 0
        %408 = vmatprep.subr.bf16.mxu0 0
        %409 = vmatpush1.bf16.msra.mxu0 0
        %410 = vmatprep.subr.bf16.mxu0 0
        %411 = vmatpush1.bf16.msra.mxu0 0
        %412 = vmatprep.mubr.bf16.mxu0 0
        %413 = vmatmul.mubr.bf16.gmra.mrb[0].mxu0 %v330
        %v414 = vpop.f32.mrb[0].mxu0
        %v415 = vadd.f32 %v324, %v414
        %v416 = vpop.f32.mrb[0].mxu0
        %v417 = vpop.f32.mrb[0].mxu0
        %v418 = vadd.f32 %v324, %v417
        %v419 = vpop.f32.mrb[0].mxu0
        %420 = vdwg.mxu0
        %v421 = vld [vmem:[#allocation2] sm:$0xff]
        %v422 = vld [vmem:[#allocation2 + $0x8] sm:$0xff]
        %v423 = vmul.f32 %v421, 0.5
        %v424 = vmul.f32 %v422, 0.5
        %v425 = vadd.f32 %v423, %v415
        %v426 = vadd.f32 %v424, %v418
        %vm427 = vcmp.ge.f32.partialorder %v425, 1.0
        %vm428 = vcmp.ge.f32.partialorder %v426, 1.0
        %v429 = vsel %vm427, 0.0, %v425
        %v430 = vsel %vm428, 0.0, %v426
        %431 = vst [vmem:[#allocation2] sm:$0xff] %v429
        %432 = vst [vmem:[#allocation2 + $0x8] sm:$0xff] %v430
        %v433 = vsel %vm427, 1, 0
        %v434 = vsel %vm428, 1, 0
        %v435 = vcvt.s32.f32 %v433
        %v436 = vcvt.s32.f32 %v434
        %v437 = vpack.c.bf16 %v436, %v435
        %v438 = vld [vmem:[#allocation9] sm:$0xf]
        %v439 = vld [vmem:[#allocation9 + $0x4] sm:$0xf]
        %v440 = vld [vmem:[#allocation9 + $0x8] sm:$0xf]
        %v441 = vld [vmem:[#allocation9 + $0xc] sm:$0xf]
        %v442 = vld [vmem:[#allocation9 + $0x10] sm:$0xf]
        %v443 = vld [vmem:[#allocation9 + $0x14] sm:$0xf]
        %v444 = vld [vmem:[#allocation9 + $0x18] sm:$0xf]
        %v445 = vld [vmem:[#allocation9 + $0x1c] sm:$0xf]
        %v446 = vld [vmem:[#allocation9 + $0x20] sm:$0xf]
        %v447 = vld [vmem:[#allocation9 + $0x24] sm:$0xf]
        %v448 = vld [vmem:[#allocation9 + $0x28] sm:$0xf]
        %v449 = vld [vmem:[#allocation9 + $0x2c] sm:$0xf]
        %v450 = vld [vmem:[#allocation9 + $0x30] sm:$0xf]
        %v451 = vld [vmem:[#allocation9 + $0x34] sm:$0xf]
        %v452 = vld [vmem:[#allocation9 + $0x38] sm:$0xf]
        %v453 = vld [vmem:[#allocation9 + $0x3c] sm:$0xf]
        %v454 = vld [vmem:[%s4] sm:$0x1]
        %v456 = vlaneseq
        %v457 = vshrl.u32 %v456, 7
        %v458 = vsub.s32 0, %v457
        %v459 = vrot.slane %v454, %v458
        %v477 = vunpack.c.l.b16 %v438
        %v478 = vunpack.c.l.b16 %v439
        %v479 = vunpack.c.l.b16 %v440
        %v480 = vunpack.c.l.b16 %v441
        %v481 = vunpack.c.l.b16 %v442
        %v482 = vunpack.c.l.b16 %v443
        %v483 = vunpack.c.l.b16 %v444
        %v484 = vunpack.c.l.b16 %v445
        %v485 = vunpack.c.l.b16 %v446
        %v486 = vunpack.c.l.b16 %v447
        %v487 = vunpack.c.l.b16 %v448
        %v488 = vunpack.c.l.b16 %v449
        %v489 = vunpack.c.l.b16 %v450
        %v490 = vunpack.c.l.b16 %v451
        %v491 = vunpack.c.l.b16 %v452
        %v492 = vunpack.c.l.b16 %v453
        %v493 = vpack.c.b16 %v478, %v477
        %v494 = vpack.c.b16 %v480, %v479
        %v495 = vpack.c.b16 %v482, %v481
        %v496 = vpack.c.b16 %v484, %v483
        %v497 = vpack.c.b16 %v486, %v485
        %v498 = vpack.c.b16 %v488, %v487
        %v499 = vpack.c.b16 %v490, %v489
        %v500 = vpack.c.b16 %v492, %v491
        %509 = vmatprep.subr.bf16.mxu0 0
        %510 = vmatpush1.bf16.msra.mxu0 %v493
        %511 = vmatprep.subr.bf16.mxu0 0
        %512 = vmatpush1.bf16.msra.mxu0 %v494
        %513 = vmatprep.subr.bf16.mxu0 0
        %514 = vmatpush1.bf16.msra.mxu0 %v495
        %515 = vmatprep.subr.bf16.mxu0 0
        %516 = vmatpush1.bf16.msra.mxu0 %v496
        %517 = vmatprep.subr.bf16.mxu0 0
        %518 = vmatpush1.bf16.msra.mxu0 %v497
        %519 = vmatprep.subr.bf16.mxu0 0
        %520 = vmatpush1.bf16.msra.mxu0 %v498
        %521 = vmatprep.subr.bf16.mxu0 0
        %522 = vmatpush1.bf16.msra.mxu0 %v499
        %523 = vmatprep.subr.bf16.mxu0 0
        %524 = vmatpush1.bf16.msra.mxu0 %v500
        %525 = vmatprep.subr.bf16.mxu0 0
        %526 = vmatpush1.bf16.msra.mxu0 0
        %527 = vmatprep.subr.bf16.mxu0 0
        %528 = vmatpush1.bf16.msra.mxu0 0
        %529 = vmatprep.subr.bf16.mxu0 0
        %530 = vmatpush1.bf16.msra.mxu0 0
        %531 = vmatprep.subr.bf16.mxu0 0
        %532 = vmatpush1.bf16.msra.mxu0 0
        %533 = vmatprep.subr.bf16.mxu0 0
        %534 = vmatpush1.bf16.msra.mxu0 0
        %535 = vmatprep.subr.bf16.mxu0 0
        %536 = vmatpush1.bf16.msra.mxu0 0
        %537 = vmatprep.subr.bf16.mxu0 0
        %538 = vmatpush1.bf16.msra.mxu0 0
        %539 = vmatprep.subr.bf16.mxu0 0
        %540 = vmatpush1.bf16.msra.mxu0 0
        %541 = vmatprep.mubr.bf16.mxu0 0
        %542 = vmatmul.mubr.bf16.gmra.mrb[0].mxu0 %v437
        %v543 = vpop.f32.mrb[0].mxu0
        %v544 = vadd.f32 %v459, %v543
        %v545 = vpop.f32.mrb[0].mxu0
        %v546 = vpop.f32.mrb[0].mxu0
        %v547 = vadd.f32 %v459, %v546
        %v548 = vpop.f32.mrb[0].mxu0
        %549 = vdwg.mxu0
        %v550 = vld [vmem:[#allocation3] sm:$0xff]
        %v551 = vld [vmem:[#allocation3 + $0x8] sm:$0xff]
        %v552 = vmul.f32 %v550, 0.5
        %v553 = vmul.f32 %v551, 0.5
        %v554 = vadd.f32 %v552, %v544
        %v555 = vadd.f32 %v553, %v547
        %vm556 = vcmp.ge.f32.partialorder %v554, 1.0
        %vm557 = vcmp.ge.f32.partialorder %v555, 1.0
        %v558 = vsel %vm556, 0.0, %v554
        %v559 = vsel %vm557, 0.0, %v555
        %560 = vst [vmem:[#allocation3] sm:$0xff] %v558
        %561 = vst [vmem:[#allocation3 + $0x8] sm:$0xff] %v559
        %v562 = vsel %vm556, 1, 0
        %v563 = vsel %vm557, 1, 0
        %v564 = vcvt.s32.f32 %v562
        %v565 = vcvt.s32.f32 %v563
        %v566 = vpack.c.bf16 %v565, %v564
        %v568 = vunpack.c.l.b16 %v566
        %v569 = vunpack.c.h.b16 %v566
        %v570 = vpack.c.b16 %v568, %v568
        %v571 = vpack.c.b16 %v569, %v569
        %574 = vst [vmem:[%s289] sm:$0xf] %v570
        %575 = vst [vmem:[%s289 + $0x4] sm:$0xf] %v571
        %s576 = sand.u32 %s157, 1
        %s577 = scalar_lea.sflag [#allocation6], %s576
        %s578 = sand.u32 %s157, 1
        %s579 = smul.addr %s578, 8
        %s580 = scalar_lea.vmem [#allocation10], %s579
        // Predicated region
        $region57: #{tpu_custom_call.1} parent=39 // pred_check
          %p581 = pneg %p167
        $region58: #{tpu_custom_call.1} parent=39 // pred_check_branch
          %583 = sbr.rel (%p581) target = $region60
        $region59: #{tpu_custom_call.1} parent=39 // pred_region
          %s584 = smul.u32 2, %s27
          %s586 = ssub.s32 128, 128
          %587 = vsyncadd %s577, %s586
          %s588 = smul.addr %s28, 4
          %s589 = sadd.s32 %s584, %s588
          %s590 = smul.addr %s589, 64
          %s591 = scalar_lea.hbm %s5, %s590
          %s592 = sshll.u32 %s580, 4
          %s593 = int_to_ptr.vmem [resolvable:$true] %s592
          %598 = dma.vmem_to_hbm [thread:$0]  %s593, 128, %s591, %s577, 64, 64, 4
        $region60: #{tpu_custom_call.1} parent=39 // pred_fallthru
          _
      $region40: #{tpu_custom_call.1} parent=5 // pred_fallthru
        _
      %p599 = scmp.le.s32.totalorder 2, %s18
      // Predicated region
      $region61: #{tpu_custom_call.1} parent=5 // pred_check
        %p600 = pneg %p599
      $region62: #{tpu_custom_call.1} parent=5 // pred_check_branch
        %602 = sbr.rel (%p600) target = $region64
      $region63: #{tpu_custom_call.1} parent=5 // pred_region
        %s603 = ssub.s32 %s18, 2
        // Predicated region
        $region65: #{tpu_custom_call.1} parent=63 // pred_check
          %p604 = pneg %p173
        $region66: #{tpu_custom_call.1} parent=63 // pred_check_branch
          %606 = sbr.rel (%p604) target = $region68
        $region67: #{tpu_custom_call.1} parent=63 // pred_region
          %s607 = sand.u32 %s158, 1
          %s608 = scalar_lea.sflag [#allocation6], %s607
          %s609 = sand.u32 %s158, 1
          %s610 = smul.addr %s609, 8
          %s611 = scalar_lea.vmem [#allocation10], %s610
          %612 = dma.done %s608, 128
        $region68: #{tpu_custom_call.1} parent=63 // pred_fallthru
          _
      $region64: #{tpu_custom_call.1} parent=5 // pred_fallthru
        _
    $region6: #{tpu_custom_call.1} parent=1 // loop_footer
      %s22 = sadd.s32 1, %s18
    $region7: #{tpu_custom_call.1} parent=1 // loop_footer_branch
      %17 = sbr.rel target = $region3
    $region8: #{tpu_custom_call.1} parent=1 // loop_exit
      _
    %613 = vsyncpa [#allocation5], 1
    %s614 = scalar_lea.sflag [#allocation5], 1
    %615 = vsyncpa %s614, 1
    %616 = vsyncpa [#allocation8], 1
    %617 = vsyncpa [#allocation6], 1
    %s618 = scalar_lea.sflag [#allocation6], 1
    %619 = vsyncpa %s618, 1

</llo_original>
